<compile_context>
chip_gen: v7x
topology: tpu7x:2x2x1
jax: 0.10.0
libtpu: 0.0.40
codegen_flags: <defaults>
</compile_context>

<pallas_src>
import functools

import jax
import jax.numpy as jnp
from jax import lax
from jax.experimental import pallas as pl
from jax.experimental.pallas import tpu as pltpu


def attn_prop_kernel(x_ref, w1_ref, b1_ref, w2_ref, b2_ref, w3_ref, b3_ref,
                     o_ref, *, n_pts, n_batch):
    # ---- MLP (three 1x1 convs == channel-mixing matmuls) on the wide slab ----
    x = x_ref[...].astype(jnp.bfloat16)                                   # (D, Bt*N)
    h1 = jnp.dot(w1_ref[...], x, preferred_element_type=jnp.float32) + b1_ref[...]
    h1 = jnp.maximum(h1, 0.0).astype(jnp.bfloat16)                        # (2D, Bt*N)
    h2 = jnp.dot(w2_ref[...], h1, preferred_element_type=jnp.float32) + b2_ref[...]
    h2 = jnp.maximum(h2, 0.0).astype(jnp.bfloat16)                        # (2D, Bt*N)
    f = jnp.dot(w3_ref[...], h2, preferred_element_type=jnp.float32) + b3_ref[...]
    f16 = f.astype(jnp.bfloat16)                                          # (D, Bt*N)

    # ---- per-batch attention: A = softmax(f^T f, axis=0); out = f @ A ----
    # TODO(synk): for production N (1k-2k keypoints) tile the attention over
    # output columns of A (extra grid axis over N/tn) and set vmem_limit_bytes,
    # so the resident (N, N) intermediates stay within v7x's 64 MiB VMEM.
    for b in range(n_batch):                          # small, static trip count
        cols = slice(b * n_pts, (b + 1) * n_pts)
        fb = f16[:, cols]                             # (D, N) bf16
        # scores[i, j] = sum_d f[d, i] * f[d, j]  (contract dim 0, no explicit .T)
        scores = lax.dot_general(
            fb, fb, dimension_numbers=(((0,), (0,)), ((), ())),
            preferred_element_type=jnp.float32)       # (N, N) f32
        m = jnp.max(scores, axis=0, keepdims=True)    # (1, N)
        e = jnp.exp(scores - m)                       # (N, N) f32
        s = jnp.sum(e, axis=0, keepdims=True)         # (1, N)
        # Fold the 1/s column scale into the (D, N) result instead of scaling
        # the (N, N) matrix: identical math, ~4x fewer scale FLOPs, one fewer
        # live NxN f32 intermediate.
        u = jnp.dot(fb, e.astype(jnp.bfloat16),
                    preferred_element_type=jnp.float32)                   # (D, N)
        o_ref[:, cols] = (u * pl.reciprocal(s, approx=True)).astype(o_ref.dtype)


def _pick_block_b(batch):
    """Largest divisor of `batch` that still leaves >= 2 grid steps (v7x megacore)."""
    target = max(1, batch // 2)
    for bb in range(target, 0, -1):
        if batch % bb == 0:
            return bb
    return 1


@jax.jit
def attentional_propagation2(x, w1, b1, w2, b2, w3, b3):
    B, D, N = x.shape
    D2 = 2 * D
    block_b = _pick_block_b(B)
    grid_b = B // block_b

    # Lane-dense (D, B*N) slab for the kernel; weights cast to bf16 once here
    # (accumulation stays f32 inside the kernel); biases stay f32 as (C, 1).
    x2 = jnp.transpose(x, (1, 0, 2)).reshape(D, B * N)
    w1b = w1.astype(jnp.bfloat16)
    w2b = w2.astype(jnp.bfloat16)
    w3b = w3.astype(jnp.bfloat16)
    b1c = b1.reshape(D2, 1)
    b2c = b2.reshape(D2, 1)
    b3c = b3.reshape(D, 1)

    kernel = functools.partial(attn_prop_kernel, n_pts=N, n_batch=block_b)
    out2 = pl.pallas_call(
        kernel,
        out_shape=jax.ShapeDtypeStruct((D, B * N), x.dtype),
        grid_spec=pltpu.PrefetchScalarGridSpec(
            num_scalar_prefetch=0,
            grid=(grid_b,),
            in_specs=[
                pl.BlockSpec((D, block_b * N), lambda i: (0, i)),   # x slab (block_b batches)
                pl.BlockSpec((D2, D), lambda i: (0, 0)),            # W1 (bf16)
                pl.BlockSpec((D2, 1), lambda i: (0, 0)),            # b1
                pl.BlockSpec((D2, D2), lambda i: (0, 0)),           # W2 (bf16)
                pl.BlockSpec((D2, 1), lambda i: (0, 0)),            # b2
                pl.BlockSpec((D, D2), lambda i: (0, 0)),            # W3 (bf16)
                pl.BlockSpec((D, 1), lambda i: (0, 0)),             # b3
            ],
            out_specs=pl.BlockSpec((D, block_b * N), lambda i: (0, i)),
        ),
        compiler_params=pltpu.CompilerParams(
            dimension_semantics=("parallel",)),
    )(x2, w1b, b1c, w2b, b2c, w3b, b3c)

    # back to the PyTorch (B, D, N) layout (wrapper-side layout plumbing).
    return out2.reshape(D, B, N).transpose(1, 0, 2)


def _reference(x, w1, b1, w2, b2, w3, b3):
    # pure-JAX f32 reference for the correctness check
    h1 = jnp.maximum(jnp.einsum("oc,bcn->bon", w1, x) + b1[None, :, None], 0.0)
    h2 = jnp.maximum(jnp.einsum("oc,bcn->bon", w2, h1) + b2[None, :, None], 0.0)
    f = jnp.einsum("oc,bcn->bon", w3, h2) + b3[None, :, None]
    a = jnp.einsum("bdm,bdn->bmn", f, f)
    a = jax.nn.softmax(a, axis=-2)
    return jnp.einsum("bdn,bnm->bdm", f, a)


if __name__ == "__main__":
    B, D, N = 2, 32, 128   # batch, feature_dim, number of points
    D2 = 2 * D

    key = jax.random.PRNGKey(0)
    kx, k1, k2, k3, kb1, kb2 = jax.random.split(key, 6)

    x = jax.random.normal(kx, (B, D, N), dtype=jnp.float32)

    # deterministic parameter init (Conv1d k=1 weights collapse to (out_ch, in_ch))
    w1 = jax.random.normal(k1, (D2, D), dtype=jnp.float32) * (1.0 / jnp.sqrt(D))
    b1 = jax.random.normal(kb1, (D2,), dtype=jnp.float32) * 0.01
    w2 = jax.random.normal(k2, (D2, D2), dtype=jnp.float32) * (1.0 / jnp.sqrt(D2))
    b2 = jax.random.normal(kb2, (D2,), dtype=jnp.float32) * 0.01
    w3 = jax.random.normal(k3, (D, D2), dtype=jnp.float32) * (1.0 / jnp.sqrt(D2))
    b3 = jnp.zeros((D,), dtype=jnp.float32)   # nn.init.constant_(self.mlp[-1].bias, 0.0)

    out = attentional_propagation2(x, w1, b1, w2, b2, w3, b3)
    out = jax.block_until_ready(out)

    ref = _reference(x, w1, b1, w2, b2, w3, b3)
    assert out.shape == (B, D, N)
    # looser tolerance than the pure-f32 version: matmul operands are bf16
    # (f32 accumulate) per the MXU-throughput recommendation.
    assert jnp.allclose(out, ref, rtol=5e-2, atol=5e-2), "mismatch vs reference"

    print("KERNEL_OK")
</pallas_src>

<mosaic_0001>
module attributes {stable_mosaic.version = 11 : i64} {
  func.func @attn_prop_kernel(%arg0: i32, %arg1: memref<32x128xf32, #tpu.memory_space<vmem>>, %arg2: memref<64x32xbf16, #tpu.memory_space<vmem>>, %arg3: memref<64x1xf32, #tpu.memory_space<vmem>>, %arg4: memref<64x64xbf16, #tpu.memory_space<vmem>>, %arg5: memref<64x1xf32, #tpu.memory_space<vmem>>, %arg6: memref<32x64xbf16, #tpu.memory_space<vmem>>, %arg7: memref<32x1xf32, #tpu.memory_space<vmem>>, %arg8: memref<32x128xf32, #tpu.memory_space<vmem>>) attributes {dimension_semantics = [#tpu.dimension_semantics<parallel>], iteration_bounds = array<i64: 2>, scalar_prefetch = 0 : i64, scratch_operands = 0 : i64, tpu.core_type = #tpu.core_type<tc>, window_params = [{transform_indices = @transform_0, window_bounds = array<i64: 32, 128>}, {pipeline_mode = #tpu.pipeline_mode<synchronous>, transform_indices = @transform_1, window_bounds = array<i64: 64, 32>}, {pipeline_mode = #tpu.pipeline_mode<synchronous>, transform_indices = @transform_2, window_bounds = array<i64: 64, 1>}, {pipeline_mode = #tpu.pipeline_mode<synchronous>, transform_indices = @transform_3, window_bounds = array<i64: 64, 64>}, {pipeline_mode = #tpu.pipeline_mode<synchronous>, transform_indices = @transform_4, window_bounds = array<i64: 64, 1>}, {pipeline_mode = #tpu.pipeline_mode<synchronous>, transform_indices = @transform_5, window_bounds = array<i64: 32, 64>}, {pipeline_mode = #tpu.pipeline_mode<synchronous>, transform_indices = @transform_6, window_bounds = array<i64: 32, 1>}, {transform_indices = @transform_7, window_bounds = array<i64: 32, 128>}]} {
    %c0 = arith.constant 0 : index
    %c0_0 = arith.constant 0 : index
    %0 = vector.load %arg1[%c0, %c0_0] : memref<32x128xf32, #tpu.memory_space<vmem>>, vector<32x128xf32>
    %1 = arith.truncf %0 : vector<32x128xf32> to vector<32x128xbf16>
    %c0_1 = arith.constant 0 : index
    %c0_2 = arith.constant 0 : index
    %2 = vector.load %arg2[%c0_1, %c0_2] : memref<64x32xbf16, #tpu.memory_space<vmem>>, vector<64x32xbf16>
    %cst = arith.constant dense<0.000000e+00> : vector<64x128xf32>
    %3 = tpu.matmul %2, %1, %cst {dimension_numbers = #tpu.dot_dimension_numbers<[1], [0], [0], [1], [0, 0, 1, 1], [], []>} : vector<64x32xbf16>, vector<32x128xbf16>, vector<64x128xf32> -> vector<64x128xf32>
    %c0_3 = arith.constant 0 : index
    %c0_4 = arith.constant 0 : index
    %4 = vector.load %arg3[%c0_3, %c0_4] : memref<64x1xf32, #tpu.memory_space<vmem>>, vector<64x1xf32>
    %5 = vector.broadcast %4 : vector<64x1xf32> to vector<64x128xf32>
    %6 = arith.addf %3, %5 : vector<64x128xf32>
    %cst_5 = arith.constant 0.000000e+00 : f32
    %7 = vector.broadcast %cst_5 : f32 to vector<64x128xf32>
    %8 = arith.maximumf %6, %7 : vector<64x128xf32>
    %9 = arith.truncf %8 : vector<64x128xf32> to vector<64x128xbf16>
    %c0_6 = arith.constant 0 : index
    %c0_7 = arith.constant 0 : index
    %10 = vector.load %arg4[%c0_6, %c0_7] : memref<64x64xbf16, #tpu.memory_space<vmem>>, vector<64x64xbf16>
    %cst_8 = arith.constant dense<0.000000e+00> : vector<64x128xf32>
    %11 = tpu.matmul %10, %9, %cst_8 {dimension_numbers = #tpu.dot_dimension_numbers<[1], [0], [0], [1], [0, 0, 1, 1], [], []>} : vector<64x64xbf16>, vector<64x128xbf16>, vector<64x128xf32> -> vector<64x128xf32>
    %c0_9 = arith.constant 0 : index
    %c0_10 = arith.constant 0 : index
    %12 = vector.load %arg5[%c0_9, %c0_10] : memref<64x1xf32, #tpu.memory_space<vmem>>, vector<64x1xf32>
    %13 = vector.broadcast %12 : vector<64x1xf32> to vector<64x128xf32>
    %14 = arith.addf %11, %13 : vector<64x128xf32>
    %cst_11 = arith.constant 0.000000e+00 : f32
    %15 = vector.broadcast %cst_11 : f32 to vector<64x128xf32>
    %16 = arith.maximumf %14, %15 : vector<64x128xf32>
    %17 = arith.truncf %16 : vector<64x128xf32> to vector<64x128xbf16>
    %c0_12 = arith.constant 0 : index
    %c0_13 = arith.constant 0 : index
    %18 = vector.load %arg6[%c0_12, %c0_13] : memref<32x64xbf16, #tpu.memory_space<vmem>>, vector<32x64xbf16>
    %cst_14 = arith.constant dense<0.000000e+00> : vector<32x128xf32>
    %19 = tpu.matmul %18, %17, %cst_14 {dimension_numbers = #tpu.dot_dimension_numbers<[1], [0], [0], [1], [0, 0, 1, 1], [], []>} : vector<32x64xbf16>, vector<64x128xbf16>, vector<32x128xf32> -> vector<32x128xf32>
    %c0_15 = arith.constant 0 : index
    %c0_16 = arith.constant 0 : index
    %20 = vector.load %arg7[%c0_15, %c0_16] : memref<32x1xf32, #tpu.memory_space<vmem>>, vector<32x1xf32>
    %21 = vector.broadcast %20 : vector<32x1xf32> to vector<32x128xf32>
    %22 = arith.addf %19, %21 : vector<32x128xf32>
    %23 = arith.truncf %22 : vector<32x128xf32> to vector<32x128xbf16>
    %cst_17 = arith.constant dense<0.000000e+00> : vector<128x128xf32>
    %24 = tpu.matmul %23, %23, %cst_17 {dimension_numbers = #tpu.dot_dimension_numbers<[0], [0], [1], [1], [0, 1, 1, 1], [], []>} : vector<32x128xbf16>, vector<32x128xbf16>, vector<128x128xf32> -> vector<128x128xf32>
    %cst_18 = arith.constant dense<0xFF800000> : vector<128xf32>
    %25 = vector.multi_reduction <maximumf>, %24, %cst_18 [0] : vector<128x128xf32> to vector<128xf32>
    %26 = vector.shape_cast %25 : vector<128xf32> to vector<1x128xf32>
    %27 = vector.broadcast %26 : vector<1x128xf32> to vector<128x128xf32>
    %28 = arith.subf %24, %27 : vector<128x128xf32>
    %29 = math.exp %28 : vector<128x128xf32>
    %cst_19 = arith.constant dense<0.000000e+00> : vector<128xf32>
    %30 = vector.multi_reduction <add>, %29, %cst_19 [0] : vector<128x128xf32> to vector<128xf32>
    %31 = vector.shape_cast %30 : vector<128xf32> to vector<1x128xf32>
    %32 = arith.truncf %29 : vector<128x128xf32> to vector<128x128xbf16>
    %cst_20 = arith.constant dense<0.000000e+00> : vector<32x128xf32>
    %33 = tpu.matmul %23, %32, %cst_20 {dimension_numbers = #tpu.dot_dimension_numbers<[1], [0], [0], [1], [0, 0, 1, 1], [], []>} : vector<32x128xbf16>, vector<128x128xbf16>, vector<32x128xf32> -> vector<32x128xf32>
    %34 = tpu.reciprocal %31 {approx = true} : vector<1x128xf32> -> vector<1x128xf32>
    %35 = vector.broadcast %34 : vector<1x128xf32> to vector<32x128xf32>
    %36 = arith.mulf %33, %35 : vector<32x128xf32>
    %c0_21 = arith.constant 0 : index
    %c0_22 = arith.constant 0 : index
    %37 = vector.load %arg8[%c0_21, %c0_22] : memref<32x128xf32, #tpu.memory_space<vmem>>, vector<32x128xf32>
    tpu.vector_store %arg8[%c0_21, %c0_22], %36 {strides = array<i32>} : memref<32x128xf32, #tpu.memory_space<vmem>>, vector<32x128xf32>,
    return
  }
  func.func @transform_0(%arg0: i32) -> (i32, i32) {
    %c0_i32 = arith.constant 0 : i32
    %c0_i32_0 = arith.constant 0 : i32
    return %c0_i32, %arg0 : i32, i32
  }
  func.func @transform_1(%arg0: i32) -> (i32, i32) {
    %c0_i32 = arith.constant 0 : i32
    %c0_i32_0 = arith.constant 0 : i32
    %c0_i32_1 = arith.constant 0 : i32
    return %c0_i32, %c0_i32_0 : i32, i32
  }
  func.func @transform_2(%arg0: i32) -> (i32, i32) {
    %c0_i32 = arith.constant 0 : i32
    %c0_i32_0 = arith.constant 0 : i32
    %c0_i32_1 = arith.constant 0 : i32
    return %c0_i32, %c0_i32_0 : i32, i32
  }
  func.func @transform_3(%arg0: i32) -> (i32, i32) {
    %c0_i32 = arith.constant 0 : i32
    %c0_i32_0 = arith.constant 0 : i32
    %c0_i32_1 = arith.constant 0 : i32
    return %c0_i32, %c0_i32_0 : i32, i32
  }
  func.func @transform_4(%arg0: i32) -> (i32, i32) {
    %c0_i32 = arith.constant 0 : i32
    %c0_i32_0 = arith.constant 0 : i32
    %c0_i32_1 = arith.constant 0 : i32
    return %c0_i32, %c0_i32_0 : i32, i32
  }
  func.func @transform_5(%arg0: i32) -> (i32, i32) {
    %c0_i32 = arith.constant 0 : i32
    %c0_i32_0 = arith.constant 0 : i32
    %c0_i32_1 = arith.constant 0 : i32
    return %c0_i32, %c0_i32_0 : i32, i32
  }
  func.func @transform_6(%arg0: i32) -> (i32, i32) {
    %c0_i32 = arith.constant 0 : i32
    %c0_i32_0 = arith.constant 0 : i32
    %c0_i32_1 = arith.constant 0 : i32
    return %c0_i32, %c0_i32_0 : i32, i32
  }
  func.func @transform_7(%arg0: i32) -> (i32, i32) {
    %c0_i32 = arith.constant 0 : i32
    %c0_i32_0 = arith.constant 0 : i32
    return %c0_i32, %arg0 : i32, i32
  }
}

</mosaic_0001>

<llo_original>
// kernel: attentional_propagation2.1
$region0: #{attentional_propagation2.1}
  #allocation0 [shape = 'u32[]', space=smem, size = 0x4, offset = 0x4, fixed_abs, tag = 'smem constant byte address 0x4 - core index']
  #allocation1 [shape = 'u32[144,128]{1,0:T(1,128)}', space=vmem, size = 0x12000, scoped, tag = 'internal scratch']
  %s0 = inlined_call_operand.vmem [shape: f32[32,256], index: 0, kind: input, shape index: {}]
  %s1 = inlined_call_operand.vmem [shape: bf16[64,32], index: 1, kind: input, shape index: {}]
  %s2 = inlined_call_operand.vmem [shape: f32[64,1], index: 2, kind: input, shape index: {}]
  %s3 = inlined_call_operand.vmem [shape: bf16[64,64], index: 3, kind: input, shape index: {}]
  %s4 = inlined_call_operand.vmem [shape: f32[64,1], index: 4, kind: input, shape index: {}]
  %s5 = inlined_call_operand.vmem [shape: bf16[32,64], index: 5, kind: input, shape index: {}]
  %s6 = inlined_call_operand.vmem [shape: f32[32,1], index: 6, kind: input, shape index: {}]
  %s7 = inlined_call_operand.vmem [shape: f32[32,256], index: 7, kind: output, shape index: {}]
  %s8 = sld [smem:[#allocation0]]
  $region133: #{attentional_propagation2.1} parent=0
    _
  %s10 = ssub.s32 1, %s8
  %s11 = scalar_select 0, %s10, %s8
  $region1: #{attentional_propagation2.1} parent=0
    #allocation2 [shape = 'u8[32768]{0}', space=vmem, size = 0x8000, scoped, tag = 'input window, operand 0']
    #allocation3 [shape = 'u8[32768]{0}', space=vmem, size = 0x8000, scoped, tag = 'output window, operand 0']
    loop: start=0, step=1, limit=4
    $region2: #{attentional_propagation2.1} parent=1 // loop_pre_header
      _
    $region3: #{attentional_propagation2.1} parent=1 // loop_header
      %s13 = sphi 0, %s17
      %p14 = scmp.ge.s32.totalorder %s13, 4
      %s23 = sphi 0, %s25
      %s26 = sphi 0, %s23
      %s27 = sphi 0, %s26
      %s43 = sphi 0, %s27
      %s47 = sphi 0, %s47
      %s49 = sphi 0, %s47
      %s50 = sphi 0, %s49
      %s64 = sphi 0, %s50
      %s68 = sphi 0, %s68
      %s70 = sphi 0, %s68
      %s71 = sphi 0, %s70
      %s85 = sphi 0, %s71
      %s89 = sphi 0, %s89
      %s91 = sphi 0, %s89
      %s92 = sphi 0, %s91
      %s106 = sphi 0, %s92
      %s110 = sphi 0, %s110
      %s112 = sphi 0, %s110
      %s113 = sphi 0, %s112
      %s127 = sphi 0, %s113
      %s131 = sphi 0, %s131
      %s133 = sphi 0, %s131
      %s134 = sphi 0, %s133
      %s148 = sphi 0, %s134
      %s152 = sphi 0, %s152
      %s154 = sphi 0, %s152
      %s155 = sphi 0, %s154
      %s169 = sphi 0, %s155
      %s175 = sphi 0, %s177
      %s178 = sphi 0, %s175
      %s179 = sphi 0, %s178
      %s195 = sphi 0, %s179
    $region4: #{attentional_propagation2.1} parent=1 // loop_header_branch
      %16 = sbr.rel (%p14) target = $region8
    $region5: #{attentional_propagation2.1} parent=1 // loop_body
      %s18 = ssub.s32 %s13, 1
      %s19 = ssub.s32 %s13, 2
      %s20 = sadd.s32 %s13, 1
      %s21 = ssub.s32 %s13, %s20
      %p22 = scmp.eq.s32.totalorder %s21, 0
      %s24 = sadd.s32 %s23, 1
      %s25 = scalar_select %p22, %s23, %s24
      %p28 = pneg %p22
      %p29 = scmp.eq.s32.totalorder %s13, 1
      %p30 = por %p28, %p29
      %p31 = scmp.ne.s32.totalorder %s23, %s26
      %p32 = scmp.eq.s32.totalorder %s13, 0
      %p33 = por %p31, %p32
      %p34 = scmp.ne.s32.totalorder %s23, %s26
      %p35 = scmp.eq.s32.totalorder %s18, 1
      %p36 = por %p34, %p35
      %p37 = scmp.ne.s32.totalorder %s26, %s27
      %p38 = scmp.eq.s32.totalorder %s18, 0
      %p39 = por %p37, %p38
      %p40 = scmp.ne.s32.totalorder %s26, %s27
      %p41 = scmp.eq.s32.totalorder %s19, 1
      %p42 = por %p40, %p41
      %p44 = scmp.ne.s32.totalorder %s27, %s43
      %p45 = scmp.eq.s32.totalorder %s19, 0
      %p46 = por %p44, %p45
      %s48 = sadd.s32 %s47, 1
      %p51 = scmp.eq.s32.totalorder %s13, 1
      %p52 = scmp.ne.s32.totalorder %s47, %s49
      %p53 = scmp.eq.s32.totalorder %s13, 0
      %p54 = por %p52, %p53
      %p55 = scmp.ne.s32.totalorder %s47, %s49
      %p56 = scmp.eq.s32.totalorder %s18, 1
      %p57 = por %p55, %p56
      %p58 = scmp.ne.s32.totalorder %s49, %s50
      %p59 = scmp.eq.s32.totalorder %s18, 0
      %p60 = por %p58, %p59
      %p61 = scmp.ne.s32.totalorder %s49, %s50
      %p62 = scmp.eq.s32.totalorder %s19, 1
      %p63 = por %p61, %p62
      %p65 = scmp.ne.s32.totalorder %s50, %s64
      %p66 = scmp.eq.s32.totalorder %s19, 0
      %p67 = por %p65, %p66
      %s69 = sadd.s32 %s68, 1
      %p72 = scmp.eq.s32.totalorder %s13, 1
      %p73 = scmp.ne.s32.totalorder %s68, %s70
      %p74 = scmp.eq.s32.totalorder %s13, 0
      %p75 = por %p73, %p74
      %p76 = scmp.ne.s32.totalorder %s68, %s70
      %p77 = scmp.eq.s32.totalorder %s18, 1
      %p78 = por %p76, %p77
      %p79 = scmp.ne.s32.totalorder %s70, %s71
      %p80 = scmp.eq.s32.totalorder %s18, 0
      %p81 = por %p79, %p80
      %p82 = scmp.ne.s32.totalorder %s70, %s71
      %p83 = scmp.eq.s32.totalorder %s19, 1
      %p84 = por %p82, %p83
      %p86 = scmp.ne.s32.totalorder %s71, %s85
      %p87 = scmp.eq.s32.totalorder %s19, 0
      %p88 = por %p86, %p87
      %s90 = sadd.s32 %s89, 1
      %p93 = scmp.eq.s32.totalorder %s13, 1
      %p94 = scmp.ne.s32.totalorder %s89, %s91
      %p95 = scmp.eq.s32.totalorder %s13, 0
      %p96 = por %p94, %p95
      %p97 = scmp.ne.s32.totalorder %s89, %s91
      %p98 = scmp.eq.s32.totalorder %s18, 1
      %p99 = por %p97, %p98
      %p100 = scmp.ne.s32.totalorder %s91, %s92
      %p101 = scmp.eq.s32.totalorder %s18, 0
      %p102 = por %p100, %p101
      %p103 = scmp.ne.s32.totalorder %s91, %s92
      %p104 = scmp.eq.s32.totalorder %s19, 1
      %p105 = por %p103, %p104
      %p107 = scmp.ne.s32.totalorder %s92, %s106
      %p108 = scmp.eq.s32.totalorder %s19, 0
      %p109 = por %p107, %p108
      %s111 = sadd.s32 %s110, 1
      %p114 = scmp.eq.s32.totalorder %s13, 1
      %p115 = scmp.ne.s32.totalorder %s110, %s112
      %p116 = scmp.eq.s32.totalorder %s13, 0
      %p117 = por %p115, %p116
      %p118 = scmp.ne.s32.totalorder %s110, %s112
      %p119 = scmp.eq.s32.totalorder %s18, 1
      %p120 = por %p118, %p119
      %p121 = scmp.ne.s32.totalorder %s112, %s113
      %p122 = scmp.eq.s32.totalorder %s18, 0
      %p123 = por %p121, %p122
      %p124 = scmp.ne.s32.totalorder %s112, %s113
      %p125 = scmp.eq.s32.totalorder %s19, 1
      %p126 = por %p124, %p125
      %p128 = scmp.ne.s32.totalorder %s113, %s127
      %p129 = scmp.eq.s32.totalorder %s19, 0
      %p130 = por %p128, %p129
      %s132 = sadd.s32 %s131, 1
      %p135 = scmp.eq.s32.totalorder %s13, 1
      %p136 = scmp.ne.s32.totalorder %s131, %s133
      %p137 = scmp.eq.s32.totalorder %s13, 0
      %p138 = por %p136, %p137
      %p139 = scmp.ne.s32.totalorder %s131, %s133
      %p140 = scmp.eq.s32.totalorder %s18, 1
      %p141 = por %p139, %p140
      %p142 = scmp.ne.s32.totalorder %s133, %s134
      %p143 = scmp.eq.s32.totalorder %s18, 0
      %p144 = por %p142, %p143
      %p145 = scmp.ne.s32.totalorder %s133, %s134
      %p146 = scmp.eq.s32.totalorder %s19, 1
      %p147 = por %p145, %p146
      %p149 = scmp.ne.s32.totalorder %s134, %s148
      %p150 = scmp.eq.s32.totalorder %s19, 0
      %p151 = por %p149, %p150
      %s153 = sadd.s32 %s152, 1
      %p156 = scmp.eq.s32.totalorder %s13, 1
      %p157 = scmp.ne.s32.totalorder %s152, %s154
      %p158 = scmp.eq.s32.totalorder %s13, 0
      %p159 = por %p157, %p158
      %p160 = scmp.ne.s32.totalorder %s152, %s154
      %p161 = scmp.eq.s32.totalorder %s18, 1
      %p162 = por %p160, %p161
      %p163 = scmp.ne.s32.totalorder %s154, %s155
      %p164 = scmp.eq.s32.totalorder %s18, 0
      %p165 = por %p163, %p164
      %p166 = scmp.ne.s32.totalorder %s154, %s155
      %p167 = scmp.eq.s32.totalorder %s19, 1
      %p168 = por %p166, %p167
      %p170 = scmp.ne.s32.totalorder %s155, %s169
      %p171 = scmp.eq.s32.totalorder %s19, 0
      %p172 = por %p170, %p171
      %s173 = ssub.s32 %s13, %s20
      %p174 = scmp.eq.s32.totalorder %s173, 0
      %s176 = sadd.s32 %s175, 1
      %s177 = scalar_select %p174, %s175, %s176
      %p180 = pneg %p174
      %p181 = scmp.eq.s32.totalorder %s13, 1
      %p182 = por %p180, %p181
      %p183 = scmp.ne.s32.totalorder %s175, %s178
      %p184 = scmp.eq.s32.totalorder %s13, 0
      %p185 = por %p183, %p184
      %p186 = scmp.ne.s32.totalorder %s175, %s178
      %p187 = scmp.eq.s32.totalorder %s18, 1
      %p188 = por %p186, %p187
      %p189 = scmp.ne.s32.totalorder %s178, %s179
      %p190 = scmp.eq.s32.totalorder %s18, 0
      %p191 = por %p189, %p190
      %p192 = scmp.ne.s32.totalorder %s178, %s179
      %p193 = scmp.eq.s32.totalorder %s19, 1
      %p194 = por %p192, %p193
      %p196 = scmp.ne.s32.totalorder %s179, %s195
      %p197 = scmp.eq.s32.totalorder %s19, 0
      %p198 = por %p196, %p197
      %p199 = scmp.le.s32.totalorder 1, %s13
      %p200 = scmp.lt.s32.totalorder %s13, 3
      %p201 = pnand %p199, %p200
      %p202 = pneg %p201
      // Predicated region
      $region9: #{attentional_propagation2.1} parent=5 // pred_check
        _
      $region10: #{attentional_propagation2.1} parent=5 // pred_check_branch
        %204 = sbr.rel (%p201) target = $region12
      $region11: #{attentional_propagation2.1} parent=5 // pred_region
        %s205 = ssub.s32 %s13, 1
        // Predicated region
        $region13: #{attentional_propagation2.1} parent=11 // pred_check
          %p206 = pneg %p60
        $region14: #{attentional_propagation2.1} parent=11 // pred_check_branch
          %208 = sbr.rel (%p206) target = $region16
        $region15: #{attentional_propagation2.1} parent=11 // pred_region
          _
        $region16: #{attentional_propagation2.1} parent=11 // pred_fallthru
          _
        // Predicated region
        $region17: #{attentional_propagation2.1} parent=11 // pred_check
          %p209 = pneg %p81
        $region18: #{attentional_propagation2.1} parent=11 // pred_check_branch
          %211 = sbr.rel (%p209) target = $region20
        $region19: #{attentional_propagation2.1} parent=11 // pred_region
          _
        $region20: #{attentional_propagation2.1} parent=11 // pred_fallthru
          _
        // Predicated region
        $region21: #{attentional_propagation2.1} parent=11 // pred_check
          %p212 = pneg %p102
        $region22: #{attentional_propagation2.1} parent=11 // pred_check_branch
          %214 = sbr.rel (%p212) target = $region24
        $region23: #{attentional_propagation2.1} parent=11 // pred_region
          _
        $region24: #{attentional_propagation2.1} parent=11 // pred_fallthru
          _
        // Predicated region
        $region25: #{attentional_propagation2.1} parent=11 // pred_check
          %p215 = pneg %p123
        $region26: #{attentional_propagation2.1} parent=11 // pred_check_branch
          %217 = sbr.rel (%p215) target = $region28
        $region27: #{attentional_propagation2.1} parent=11 // pred_region
          _
        $region28: #{attentional_propagation2.1} parent=11 // pred_fallthru
          _
        // Predicated region
        $region29: #{attentional_propagation2.1} parent=11 // pred_check
          %p218 = pneg %p144
        $region30: #{attentional_propagation2.1} parent=11 // pred_check_branch
          %220 = sbr.rel (%p218) target = $region32
        $region31: #{attentional_propagation2.1} parent=11 // pred_region
          _
        $region32: #{attentional_propagation2.1} parent=11 // pred_fallthru
          _
        // Predicated region
        $region33: #{attentional_propagation2.1} parent=11 // pred_check
          %p221 = pneg %p165
        $region34: #{attentional_propagation2.1} parent=11 // pred_check_branch
          %223 = sbr.rel (%p221) target = $region36
        $region35: #{attentional_propagation2.1} parent=11 // pred_region
          _
        $region36: #{attentional_propagation2.1} parent=11 // pred_fallthru
          _
      $region12: #{attentional_propagation2.1} parent=5 // pred_fallthru
        _
      %p224 = scmp.lt.s32.totalorder %s13, 2
      // Predicated region
      $region37: #{attentional_propagation2.1} parent=5 // pred_check
        %p225 = pneg %p224
      $region38: #{attentional_propagation2.1} parent=5 // pred_check_branch
        %227 = sbr.rel (%p225) target = $region40
      $region39: #{attentional_propagation2.1} parent=5 // pred_region
        // Predicated region
        $region41: #{attentional_propagation2.1} parent=39 // pred_check
          %p228 = pneg %p33
        $region42: #{attentional_propagation2.1} parent=39 // pred_check_branch
          %230 = sbr.rel (%p228) target = $region44
        $region43: #{attentional_propagation2.1} parent=39 // pred_region
          %s231 = sand.u32 %s23, 1
          %s232 = sand.u32 %s23, 1
          %s233 = smul.addr %s232, 32
          %s234 = scalar_lea.vmem [#allocation2], %s233
          %s235 = smul.addr %s13, 8
          %s236 = scalar_lea.vmem %s0, %s235
          // Predicated region
          $region45: #{attentional_propagation2.1} parent=43 // pred_check
            _
          $region46: #{attentional_propagation2.1} parent=43 // pred_check_branch
            %238 = sbr.rel (0) target = $region48
          $region47: #{attentional_propagation2.1} parent=43 // pred_region
            // Predicated region
            $region49: #{attentional_propagation2.1} parent=47 // pred_check
              _
            $region50: #{attentional_propagation2.1} parent=47 // pred_check_branch
              %240 = sbr.rel (0) target = $region52
            $region51: #{attentional_propagation2.1} parent=47 // pred_region
              // Predicated region
              $region64: #{attentional_propagation2.1} parent=51 // pred_check
                _
              $region65: #{attentional_propagation2.1} parent=51 // pred_check_branch
                %261 = sbr.rel (0) target = $region67
              $region66: #{attentional_propagation2.1} parent=51 // pred_region
                loop: start=0, step=1, limit=1
                $region68: #{attentional_propagation2.1} parent=66 // loop_pre_header
                  _
                $region69: #{attentional_propagation2.1} parent=66 // loop_header
                  %s263 = sphi 0, %s267
                  %p264 = scmp.ge.s32.totalorder %s263, 1
                  %s268 = sphi %s236, %s236
                  %s269 = sphi %s234, %s234
                $region70: #{attentional_propagation2.1} parent=66 // loop_header_branch
                  %266 = sbr.rel (%p264) target = $region74
                $region71: #{attentional_propagation2.1} parent=66 // loop_body
                  %v270 = vld [vmem:[%s268] sm:$0xff]
                  %271 = vst [vmem:[%s269] sm:$0xff] %v270
                  %v272 = vld [vmem:[%s268 + $0x10] sm:$0xff]
                  %273 = vst [vmem:[%s269 + $0x8] sm:$0xff] %v272
                  %v274 = vld [vmem:[%s268 + $0x20] sm:$0xff]
                  %275 = vst [vmem:[%s269 + $0x10] sm:$0xff] %v274
                  %v276 = vld [vmem:[%s268 + $0x30] sm:$0xff]
                  %277 = vst [vmem:[%s269 + $0x18] sm:$0xff] %v276
                $region72: #{attentional_propagation2.1} parent=66 // loop_footer
                  %s267 = sadd.s32 1, %s263
                $region73: #{attentional_propagation2.1} parent=66 // loop_footer_branch
                  %262 = sbr.rel target = $region69
                $region74: #{attentional_propagation2.1} parent=66 // loop_exit
                  _
              $region67: #{attentional_propagation2.1} parent=51 // pred_fallthru
                _
              // Predicated region
              $region75: #{attentional_propagation2.1} parent=51 // pred_check
                _
              $region76: #{attentional_propagation2.1} parent=51 // pred_check_branch
                %279 = sbr.rel target = $region78
              $region77: #{attentional_propagation2.1} parent=51 // pred_region
                _
              $region78: #{attentional_propagation2.1} parent=51 // pred_fallthru
                _
            $region52: #{attentional_propagation2.1} parent=47 // pred_fallthru
              _
            // Predicated region
            $region53: #{attentional_propagation2.1} parent=47 // pred_check
              _
            $region54: #{attentional_propagation2.1} parent=47 // pred_check_branch
              %242 = sbr.rel target = $region56
            $region55: #{attentional_propagation2.1} parent=47 // pred_region
              loop: start=0, step=1, limit=1
              $region57: #{attentional_propagation2.1} parent=55 // loop_pre_header
                _
              $region58: #{attentional_propagation2.1} parent=55 // loop_header
                %s245 = sphi 0, %s249
                %p246 = scmp.ge.s32.totalorder %s245, 1
                %s250 = sphi %s236, %s236
                %s251 = sphi %s234, %s234
              $region59: #{attentional_propagation2.1} parent=55 // loop_header_branch
                %248 = sbr.rel (%p246) target = $region63
              $region60: #{attentional_propagation2.1} parent=55 // loop_body
                %v252 = vld [vmem:[%s250] sm:$0xff]
                %253 = vst [vmem:[%s251] sm:$0xff] %v252
                %v254 = vld [vmem:[%s250 + $0x10] sm:$0xff]
                %255 = vst [vmem:[%s251 + $0x8] sm:$0xff] %v254
                %v256 = vld [vmem:[%s250 + $0x20] sm:$0xff]
                %257 = vst [vmem:[%s251 + $0x10] sm:$0xff] %v256
                %v258 = vld [vmem:[%s250 + $0x30] sm:$0xff]
                %259 = vst [vmem:[%s251 + $0x18] sm:$0xff] %v258
              $region61: #{attentional_propagation2.1} parent=55 // loop_footer
                %s249 = sadd.s32 1, %s245
              $region62: #{attentional_propagation2.1} parent=55 // loop_footer_branch
                %244 = sbr.rel target = $region58
              $region63: #{attentional_propagation2.1} parent=55 // loop_exit
                _
            $region56: #{attentional_propagation2.1} parent=47 // pred_fallthru
              _
          $region48: #{attentional_propagation2.1} parent=43 // pred_fallthru
            _
          %280 = vnop
        $region44: #{attentional_propagation2.1} parent=39 // pred_fallthru
          _
      $region40: #{attentional_propagation2.1} parent=5 // pred_fallthru
        _
      %p281 = scmp.le.s32.totalorder 1, %s13
      %p282 = scmp.lt.s32.totalorder %s13, 3
      %p283 = pnand %p281, %p282
      %p284 = pneg %p283
      // Predicated region
      $region79: #{attentional_propagation2.1} parent=5 // pred_check
        _
      $region80: #{attentional_propagation2.1} parent=5 // pred_check_branch
        %286 = sbr.rel (%p283) target = $region82
      $region81: #{attentional_propagation2.1} parent=5 // pred_region
        %s287 = ssub.s32 %s13, 1
        %s288 = sand.u32 %s26, 1
        %s289 = sand.u32 %s26, 1
        %s290 = smul.addr %s289, 32
        %s291 = scalar_lea.vmem [#allocation2], %s290
        // Predicated region
        $region83: #{attentional_propagation2.1} parent=81 // pred_check
          %p292 = pneg %p39
        $region84: #{attentional_propagation2.1} parent=81 // pred_check_branch
          %294 = sbr.rel (%p292) target = $region86
        $region85: #{attentional_propagation2.1} parent=81 // pred_region
          _
        $region86: #{attentional_propagation2.1} parent=81 // pred_fallthru
          _
        %s295 = sand.u32 %s26, 1
        %s296 = sand.u32 %s26, 1
        %s297 = smul.addr %s296, 32
        %s298 = scalar_lea.vmem [#allocation2], %s297
        %p299 = pneg %p39
        %p300 = pneg %p36
        %p301 = pneg %p60
        %p302 = pneg %p57
        %p303 = pneg %p81
        %p304 = pneg %p78
        %p305 = pneg %p102
        %p306 = pneg %p99
        %p307 = pneg %p123
        %p308 = pneg %p120
        %p309 = pneg %p144
        %p310 = pneg %p141
        %p311 = pneg %p165
        %p312 = pneg %p162
        %p313 = pneg %p191
        %p314 = pneg %p188
        %s315 = sand.u32 %s178, 1
        %s316 = sand.u32 %s178, 1
        %s317 = smul.addr %s316, 32
        %s318 = scalar_lea.vmem [#allocation3], %s317
        %v320 = vld [vmem:[%s291] sm:$0xff]
        %v321 = vld [vmem:[%s291 + $0x8] sm:$0xff]
        %v322 = vld [vmem:[%s291 + $0x10] sm:$0xff]
        %v323 = vld [vmem:[%s291 + $0x18] sm:$0xff]
        %v324 = vpack.c.bf16 %v321, %v320
        %v325 = vpack.c.bf16 %v323, %v322
        %v326 = vld [vmem:[%s1] sm:$0xf]
        %v327 = vld [vmem:[%s1 + $0x4] sm:$0xf]
        %v328 = vld [vmem:[%s1 + $0x8] sm:$0xf]
        %v329 = vld [vmem:[%s1 + $0xc] sm:$0xf]
        %v330 = vld [vmem:[%s1 + $0x10] sm:$0xf]
        %v331 = vld [vmem:[%s1 + $0x14] sm:$0xf]
        %v332 = vld [vmem:[%s1 + $0x18] sm:$0xf]
        %v333 = vld [vmem:[%s1 + $0x1c] sm:$0xf]
        %v334 = vld [vmem:[%s2] sm:$0xff]
        %v335 = vld [vmem:[%s2 + $0x8] sm:$0xff]
        %v336 = vld [vmem:[%s2 + $0x10] sm:$0xff]
        %v337 = vld [vmem:[%s2 + $0x18] sm:$0xff]
        %v338 = vld [vmem:[%s2 + $0x20] sm:$0xff]
        %v339 = vld [vmem:[%s2 + $0x28] sm:$0xff]
        %v340 = vld [vmem:[%s2 + $0x30] sm:$0xff]
        %v341 = vld [vmem:[%s2 + $0x38] sm:$0xff]
        %343 = vset.pattern.permute.xlu0 0
        %344 = vperm.xlu0 %343, %v334
        %v345 = vpop.permute.xlu0 %344
        %348 = vset.pattern.permute.xlu0 0
        %349 = vperm.xlu0 %348, %v335
        %v350 = vpop.permute.xlu0 %349
        %353 = vset.pattern.permute.xlu0 0
        %354 = vperm.xlu0 %353, %v336
        %v355 = vpop.permute.xlu0 %354
        %358 = vset.pattern.permute.xlu0 0
        %359 = vperm.xlu0 %358, %v337
        %v360 = vpop.permute.xlu0 %359
        %363 = vset.pattern.permute.xlu0 0
        %364 = vperm.xlu0 %363, %v338
        %v365 = vpop.permute.xlu0 %364
        %368 = vset.pattern.permute.xlu0 0
        %369 = vperm.xlu0 %368, %v339
        %v370 = vpop.permute.xlu0 %369
        %373 = vset.pattern.permute.xlu0 0
        %374 = vperm.xlu0 %373, %v340
        %v375 = vpop.permute.xlu0 %374
        %378 = vset.pattern.permute.xlu0 0
        %379 = vperm.xlu0 %378, %v341
        %v380 = vpop.permute.xlu0 %379
        %v390 = vunpack.c.l.b16 %v326
        %v391 = vunpack.c.l.b16 %v327
        %v392 = vunpack.c.l.b16 %v328
        %v393 = vunpack.c.l.b16 %v329
        %v394 = vunpack.c.l.b16 %v330
        %v395 = vunpack.c.l.b16 %v331
        %v396 = vunpack.c.l.b16 %v332
        %v397 = vunpack.c.l.b16 %v333
        %v398 = vpack.c.b16 %v391, %v390
        %v399 = vpack.c.b16 %v393, %v392
        %v400 = vpack.c.b16 %v395, %v394
        %v401 = vpack.c.b16 %v397, %v396
        %vm402 = vcmask 261120
        %v404 = vsel %vm402, %v398, 0
        %v407 = vsel %vm402, %v399, 0
        %v410 = vsel %vm402, %v400, 0
        %v413 = vsel %vm402, %v401, 0
        %415 = vmatprep.subr.bf16.mxu0 0
        %416 = vmatpush1.bf16.msra.mxu0 %v324
        %417 = vmatprep.subr.bf16.mxu0 0
        %418 = vmatpush1.bf16.msra.mxu0 %v325
        %419 = vmatprep.subr.bf16.mxu0 0
        %420 = vmatpush1.bf16.msra.mxu0 0
        %421 = vmatprep.subr.bf16.mxu0 0
        %422 = vmatpush1.bf16.msra.mxu0 0
        %423 = vmatprep.subr.bf16.mxu0 0
        %424 = vmatpush1.bf16.msra.mxu0 0
        %425 = vmatprep.subr.bf16.mxu0 0
        %426 = vmatpush1.bf16.msra.mxu0 0
        %427 = vmatprep.subr.bf16.mxu0 0
        %428 = vmatpush1.bf16.msra.mxu0 0
        %429 = vmatprep.subr.bf16.mxu0 0
        %430 = vmatpush1.bf16.msra.mxu0 0
        %431 = vmatprep.subr.bf16.mxu0 0
        %432 = vmatpush1.bf16.msra.mxu0 0
        %433 = vmatprep.subr.bf16.mxu0 0
        %434 = vmatpush1.bf16.msra.mxu0 0
        %435 = vmatprep.subr.bf16.mxu0 0
        %436 = vmatpush1.bf16.msra.mxu0 0
        %437 = vmatprep.subr.bf16.mxu0 0
        %438 = vmatpush1.bf16.msra.mxu0 0
        %439 = vmatprep.subr.bf16.mxu0 0
        %440 = vmatpush1.bf16.msra.mxu0 0
        %441 = vmatprep.subr.bf16.mxu0 0
        %442 = vmatpush1.bf16.msra.mxu0 0
        %443 = vmatprep.subr.bf16.mxu0 0
        %444 = vmatpush1.bf16.msra.mxu0 0
        %445 = vmatprep.subr.bf16.mxu0 0
        %446 = vmatpush1.bf16.msra.mxu0 0
        %447 = vmatprep.mubr.bf16.mxu0 0
        %448 = vmatmul.mubr.bf16.gmra.mrb[0].mxu0 %v404
        %v449 = vpop.f32.mrb[0].mxu0
        %v450 = vadd.f32 %v345, %v449
        %v451 = vpop.f32.mrb[0].mxu0
        %v452 = vpop.f32.mrb[0].mxu0
        %v453 = vadd.f32 %v350, %v452
        %v454 = vpop.f32.mrb[0].mxu0
        %455 = vmatprep.mubr.bf16.mxu0 0
        %456 = vmatmul.mubr.bf16.gmra.mrb[0].mxu0 %v407
        %v457 = vpop.f32.mrb[0].mxu0
        %v458 = vadd.f32 %v355, %v457
        %v459 = vpop.f32.mrb[0].mxu0
        %v460 = vpop.f32.mrb[0].mxu0
        %v461 = vadd.f32 %v360, %v460
        %v462 = vpop.f32.mrb[0].mxu0
        %463 = vmatprep.mubr.bf16.mxu0 0
        %464 = vmatmul.mubr.bf16.gmra.mrb[0].mxu0 %v410
        %v465 = vpop.f32.mrb[0].mxu0
        %v466 = vadd.f32 %v365, %v465
        %v467 = vpop.f32.mrb[0].mxu0
        %v468 = vpop.f32.mrb[0].mxu0
        %v469 = vadd.f32 %v370, %v468
        %v470 = vpop.f32.mrb[0].mxu0
        %471 = vmatprep.mubr.bf16.mxu0 0
        %472 = vmatmul.mubr.bf16.gmra.mrb[0].mxu0 %v413
        %v473 = vpop.f32.mrb[0].mxu0
        %v474 = vadd.f32 %v375, %v473
        %v475 = vpop.f32.mrb[0].mxu0
        %v476 = vpop.f32.mrb[0].mxu0
        %v477 = vadd.f32 %v380, %v476
        %v478 = vpop.f32.mrb[0].mxu0
        %479 = vdwg.mxu0
        %v480 = vmax.f32 %v450, 0.0
        %v481 = vmax.f32 %v453, 0.0
        %v482 = vmax.f32 %v458, 0.0
        %v483 = vmax.f32 %v461, 0.0
        %v484 = vmax.f32 %v466, 0.0
        %v485 = vmax.f32 %v469, 0.0
        %v486 = vmax.f32 %v474, 0.0
        %v487 = vmax.f32 %v477, 0.0
        %v488 = vpack.c.bf16 %v481, %v480
        %v489 = vpack.c.bf16 %v483, %v482
        %v490 = vpack.c.bf16 %v485, %v484
        %v491 = vpack.c.bf16 %v487, %v486
        %v492 = vld [vmem:[%s3] sm:$0xf]
        %v493 = vld [vmem:[%s3 + $0x4] sm:$0xf]
        %v494 = vld [vmem:[%s3 + $0x8] sm:$0xf]
        %v495 = vld [vmem:[%s3 + $0xc] sm:$0xf]
        %v496 = vld [vmem:[%s3 + $0x10] sm:$0xf]
        %v497 = vld [vmem:[%s3 + $0x14] sm:$0xf]
        %v498 = vld [vmem:[%s3 + $0x18] sm:$0xf]
        %v499 = vld [vmem:[%s3 + $0x1c] sm:$0xf]
        %v500 = vld [vmem:[%s4] sm:$0xff]
        %v501 = vld [vmem:[%s4 + $0x8] sm:$0xff]
        %v502 = vld [vmem:[%s4 + $0x10] sm:$0xff]
        %v503 = vld [vmem:[%s4 + $0x18] sm:$0xff]
        %v504 = vld [vmem:[%s4 + $0x20] sm:$0xff]
        %v505 = vld [vmem:[%s4 + $0x28] sm:$0xff]
        %v506 = vld [vmem:[%s4 + $0x30] sm:$0xff]
        %v507 = vld [vmem:[%s4 + $0x38] sm:$0xff]
        %509 = vset.pattern.permute.xlu0 0
        %510 = vperm.xlu0 %509, %v500
        %v511 = vpop.permute.xlu0 %510
        %514 = vset.pattern.permute.xlu0 0
        %515 = vperm.xlu0 %514, %v501
        %v516 = vpop.permute.xlu0 %515
        %519 = vset.pattern.permute.xlu0 0
        %520 = vperm.xlu0 %519, %v502
        %v521 = vpop.permute.xlu0 %520
        %524 = vset.pattern.permute.xlu0 0
        %525 = vperm.xlu0 %524, %v503
        %v526 = vpop.permute.xlu0 %525
        %529 = vset.pattern.permute.xlu0 0
        %530 = vperm.xlu0 %529, %v504
        %v531 = vpop.permute.xlu0 %530
        %534 = vset.pattern.permute.xlu0 0
        %535 = vperm.xlu0 %534, %v505
        %v536 = vpop.permute.xlu0 %535
        %539 = vset.pattern.permute.xlu0 0
        %540 = vperm.xlu0 %539, %v506
        %v541 = vpop.permute.xlu0 %540
        %544 = vset.pattern.permute.xlu0 0
        %545 = vperm.xlu0 %544, %v507
        %v546 = vpop.permute.xlu0 %545
        %v556 = vunpack.c.l.b16 %v492
        %v557 = vunpack.c.l.b16 %v493
        %v558 = vunpack.c.l.b16 %v494
        %v559 = vunpack.c.l.b16 %v495
        %v560 = vunpack.c.l.b16 %v496
        %v561 = vunpack.c.l.b16 %v497
        %v562 = vunpack.c.l.b16 %v498
        %v563 = vunpack.c.l.b16 %v499
        %v564 = vpack.c.b16 %v557, %v556
        %v565 = vpack.c.b16 %v559, %v558
        %v566 = vpack.c.b16 %v561, %v560
        %v567 = vpack.c.b16 %v563, %v562
        %vm568 = vcmask 523264
        %v570 = vsel %vm568, %v564, 0
        %v573 = vsel %vm568, %v565, 0
        %v576 = vsel %vm568, %v566, 0
        %v579 = vsel %vm568, %v567, 0
        %581 = vmatprep.subr.bf16.mxu0 0
        %582 = vmatpush1.bf16.msra.mxu0 %v488
        %583 = vmatprep.subr.bf16.mxu0 0
        %584 = vmatpush1.bf16.msra.mxu0 %v489
        %585 = vmatprep.subr.bf16.mxu0 0
        %586 = vmatpush1.bf16.msra.mxu0 %v490
        %587 = vmatprep.subr.bf16.mxu0 0
        %588 = vmatpush1.bf16.msra.mxu0 %v491
        %589 = vmatprep.subr.bf16.mxu0 0
        %590 = vmatpush1.bf16.msra.mxu0 0
        %591 = vmatprep.subr.bf16.mxu0 0
        %592 = vmatpush1.bf16.msra.mxu0 0
        %593 = vmatprep.subr.bf16.mxu0 0
        %594 = vmatpush1.bf16.msra.mxu0 0
        %595 = vmatprep.subr.bf16.mxu0 0
        %596 = vmatpush1.bf16.msra.mxu0 0
        %597 = vmatprep.subr.bf16.mxu0 0
        %598 = vmatpush1.bf16.msra.mxu0 0
        %599 = vmatprep.subr.bf16.mxu0 0
        %600 = vmatpush1.bf16.msra.mxu0 0
        %601 = vmatprep.subr.bf16.mxu0 0
        %602 = vmatpush1.bf16.msra.mxu0 0
        %603 = vmatprep.subr.bf16.mxu0 0
        %604 = vmatpush1.bf16.msra.mxu0 0
        %605 = vmatprep.subr.bf16.mxu0 0
        %606 = vmatpush1.bf16.msra.mxu0 0
        %607 = vmatprep.subr.bf16.mxu0 0
        %608 = vmatpush1.bf16.msra.mxu0 0
        %609 = vmatprep.subr.bf16.mxu0 0
        %610 = vmatpush1.bf16.msra.mxu0 0
        %611 = vmatprep.subr.bf16.mxu0 0
        %612 = vmatpush1.bf16.msra.mxu0 0
        %613 = vmatprep.mubr.bf16.mxu0 0
        %614 = vmatmul.mubr.bf16.gmra.mrb[0].mxu0 %v570
        %v615 = vpop.f32.mrb[0].mxu0
        %v616 = vadd.f32 %v511, %v615
        %v617 = vpop.f32.mrb[0].mxu0
        %v618 = vpop.f32.mrb[0].mxu0
        %v619 = vadd.f32 %v516, %v618
        %v620 = vpop.f32.mrb[0].mxu0
        %621 = vmatprep.mubr.bf16.mxu0 0
        %622 = vmatmul.mubr.bf16.gmra.mrb[0].mxu0 %v573
        %v623 = vpop.f32.mrb[0].mxu0
        %v624 = vadd.f32 %v521, %v623
        %v625 = vpop.f32.mrb[0].mxu0
        %v626 = vpop.f32.mrb[0].mxu0
        %v627 = vadd.f32 %v526, %v626
        %v628 = vpop.f32.mrb[0].mxu0
        %629 = vmatprep.mubr.bf16.mxu0 0
        %630 = vmatmul.mubr.bf16.gmra.mrb[0].mxu0 %v576
        %v631 = vpop.f32.mrb[0].mxu0
        %v632 = vadd.f32 %v531, %v631
        %v633 = vpop.f32.mrb[0].mxu0
        %v634 = vpop.f32.mrb[0].mxu0
        %v635 = vadd.f32 %v536, %v634
        %v636 = vpop.f32.mrb[0].mxu0
        %637 = vmatprep.mubr.bf16.mxu0 0
        %638 = vmatmul.mubr.bf16.gmra.mrb[0].mxu0 %v579
        %v639 = vpop.f32.mrb[0].mxu0
        %v640 = vadd.f32 %v541, %v639
        %v641 = vpop.f32.mrb[0].mxu0
        %v642 = vpop.f32.mrb[0].mxu0
        %v643 = vadd.f32 %v546, %v642
        %v644 = vpop.f32.mrb[0].mxu0
        %645 = vdwg.mxu0
        %v646 = vmax.f32 %v616, 0.0
        %v647 = vmax.f32 %v619, 0.0
        %v648 = vmax.f32 %v624, 0.0
        %v649 = vmax.f32 %v627, 0.0
        %v650 = vmax.f32 %v632, 0.0
        %v651 = vmax.f32 %v635, 0.0
        %v652 = vmax.f32 %v640, 0.0
        %v653 = vmax.f32 %v643, 0.0
        %v654 = vpack.c.bf16 %v647, %v646
        %v655 = vpack.c.bf16 %v649, %v648
        %v656 = vpack.c.bf16 %v651, %v650
        %v657 = vpack.c.bf16 %v653, %v652
        %v658 = vld [vmem:[%s5] sm:$0xf]
        %v659 = vld [vmem:[%s5 + $0x4] sm:$0xf]
        %v660 = vld [vmem:[%s5 + $0x8] sm:$0xf]
        %v661 = vld [vmem:[%s5 + $0xc] sm:$0xf]
        %v662 = vld [vmem:[%s6] sm:$0xff]
        %v663 = vld [vmem:[%s6 + $0x8] sm:$0xff]
        %v664 = vld [vmem:[%s6 + $0x10] sm:$0xff]
        %v665 = vld [vmem:[%s6 + $0x18] sm:$0xff]
        %667 = vset.pattern.permute.xlu0 0
        %668 = vperm.xlu0 %667, %v662
        %v669 = vpop.permute.xlu0 %668
        %672 = vset.pattern.permute.xlu0 0
        %673 = vperm.xlu0 %672, %v663
        %v674 = vpop.permute.xlu0 %673
        %677 = vset.pattern.permute.xlu0 0
        %678 = vperm.xlu0 %677, %v664
        %v679 = vpop.permute.xlu0 %678
        %682 = vset.pattern.permute.xlu0 0
        %683 = vperm.xlu0 %682, %v665
        %v684 = vpop.permute.xlu0 %683
        %v690 = vunpack.c.l.b16 %v658
        %v691 = vunpack.c.l.b16 %v659
        %v692 = vunpack.c.l.b16 %v660
        %v693 = vunpack.c.l.b16 %v661
        %v694 = vpack.c.b16 %v691, %v690
        %v695 = vpack.c.b16 %v693, %v692
        %v697 = vsel %vm568, %v694, 0
        %v700 = vsel %vm568, %v695, 0
        %702 = vmatprep.subr.bf16.mxu0 0
        %703 = vmatpush1.bf16.msra.mxu0 %v654
        %704 = vmatprep.subr.bf16.mxu0 0
        %705 = vmatpush1.bf16.msra.mxu0 %v655
        %706 = vmatprep.subr.bf16.mxu0 0
        %707 = vmatpush1.bf16.msra.mxu0 %v656
        %708 = vmatprep.subr.bf16.mxu0 0
        %709 = vmatpush1.bf16.msra.mxu0 %v657
        %710 = vmatprep.subr.bf16.mxu0 0
        %711 = vmatpush1.bf16.msra.mxu0 0
        %712 = vmatprep.subr.bf16.mxu0 0
        %713 = vmatpush1.bf16.msra.mxu0 0
        %714 = vmatprep.subr.bf16.mxu0 0
        %715 = vmatpush1.bf16.msra.mxu0 0
        %716 = vmatprep.subr.bf16.mxu0 0
        %717 = vmatpush1.bf16.msra.mxu0 0
        %718 = vmatprep.subr.bf16.mxu0 0
        %719 = vmatpush1.bf16.msra.mxu0 0
        %720 = vmatprep.subr.bf16.mxu0 0
        %721 = vmatpush1.bf16.msra.mxu0 0
        %722 = vmatprep.subr.bf16.mxu0 0
        %723 = vmatpush1.bf16.msra.mxu0 0
        %724 = vmatprep.subr.bf16.mxu0 0
        %725 = vmatpush1.bf16.msra.mxu0 0
        %726 = vmatprep.subr.bf16.mxu0 0
        %727 = vmatpush1.bf16.msra.mxu0 0
        %728 = vmatprep.subr.bf16.mxu0 0
        %729 = vmatpush1.bf16.msra.mxu0 0
        %730 = vmatprep.subr.bf16.mxu0 0
        %731 = vmatpush1.bf16.msra.mxu0 0
        %732 = vmatprep.subr.bf16.mxu0 0
        %733 = vmatpush1.bf16.msra.mxu0 0
        %734 = vmatprep.mubr.bf16.mxu0 0
        %735 = vmatmul.mubr.bf16.gmra.mrb[0].mxu0 %v697
        %v736 = vpop.f32.mrb[0].mxu0
        %v737 = vadd.f32 %v669, %v736
        %v738 = vpop.f32.mrb[0].mxu0
        %v739 = vpop.f32.mrb[0].mxu0
        %v740 = vadd.f32 %v674, %v739
        %v741 = vpop.f32.mrb[0].mxu0
        %742 = vmatprep.mubr.bf16.mxu0 0
        %743 = vmatmul.mubr.bf16.gmra.mrb[0].mxu0 %v700
        %v744 = vpop.f32.mrb[0].mxu0
        %v745 = vadd.f32 %v679, %v744
        %v746 = vpop.f32.mrb[0].mxu0
        %v747 = vpop.f32.mrb[0].mxu0
        %v748 = vadd.f32 %v684, %v747
        %v749 = vpop.f32.mrb[0].mxu0
        %750 = vdwg.mxu0
        %v751 = vpack.c.bf16 %v740, %v737
        %v752 = vpack.c.bf16 %v748, %v745
        %753 = vxpose.xlu0.c.b16.start [1/8] %v751, 128
        %754 = vxpose.xlu0.c.b16.cont [2/8] %v752, 128
        %755 = vxpose.xlu0.c.b16.cont [3/8] 0, 128
        %756 = vxpose.xlu0.c.b16.cont [4/8] 0, 128
        %757 = vxpose.xlu0.c.b16.cont [5/8] 0, 128
        %758 = vxpose.xlu0.c.b16.cont [6/8] 0, 128
        %759 = vxpose.xlu0.c.b16.cont [7/8] 0, 128
        %760 = vxpose.xlu0.c.b16.end [8/8] 0, 128
        %v761 = vpop.trf.xlu0
        %v762 = vpop.trf.xlu0
        %v763 = vpop.trf.xlu0
        %v764 = vpop.trf.xlu0
        %v765 = vpop.trf.xlu0
        %v766 = vpop.trf.xlu0
        %v767 = vpop.trf.xlu0
        %v768 = vpop.trf.xlu0
        %v770 = vsel %vm402, %v761, 0
        %v773 = vsel %vm402, %v762, 0
        %v776 = vsel %vm402, %v763, 0
        %v779 = vsel %vm402, %v764, 0
        %v782 = vsel %vm402, %v765, 0
        %v785 = vsel %vm402, %v766, 0
        %v788 = vsel %vm402, %v767, 0
        %v791 = vsel %vm402, %v768, 0
        %793 = vmatprep.subr.bf16.mxu0 0
        %794 = vmatpush1.bf16.msra.mxu0 %v751
        %795 = vmatprep.subr.bf16.mxu0 0
        %796 = vmatpush1.bf16.msra.mxu0 %v752
        %797 = vmatprep.subr.bf16.mxu0 0
        %798 = vmatpush1.bf16.msra.mxu0 0
        %799 = vmatprep.subr.bf16.mxu0 0
        %800 = vmatpush1.bf16.msra.mxu0 0
        %801 = vmatprep.subr.bf16.mxu0 0
        %802 = vmatpush1.bf16.msra.mxu0 0
        %803 = vmatprep.subr.bf16.mxu0 0
        %804 = vmatpush1.bf16.msra.mxu0 0
        %805 = vmatprep.subr.bf16.mxu0 0
        %806 = vmatpush1.bf16.msra.mxu0 0
        %807 = vmatprep.subr.bf16.mxu0 0
        %808 = vmatpush1.bf16.msra.mxu0 0
        %809 = vmatprep.subr.bf16.mxu0 0
        %810 = vmatpush1.bf16.msra.mxu0 0
        %811 = vmatprep.subr.bf16.mxu0 0
        %812 = vmatpush1.bf16.msra.mxu0 0
        %813 = vmatprep.subr.bf16.mxu0 0
        %814 = vmatpush1.bf16.msra.mxu0 0
        %815 = vmatprep.subr.bf16.mxu0 0
        %816 = vmatpush1.bf16.msra.mxu0 0
        %817 = vmatprep.subr.bf16.mxu0 0
        %818 = vmatpush1.bf16.msra.mxu0 0
        %819 = vmatprep.subr.bf16.mxu0 0
        %820 = vmatpush1.bf16.msra.mxu0 0
        %821 = vmatprep.subr.bf16.mxu0 0
        %822 = vmatpush1.bf16.msra.mxu0 0
        %823 = vmatprep.subr.bf16.mxu0 0
        %824 = vmatpush1.bf16.msra.mxu0 0
        %825 = vmatprep.mubr.bf16.mxu0 0
        %826 = vmatmul.mubr.bf16.gmra.mrb[0].mxu0 %v770
        %v827 = vpop.f32.mrb[0].mxu0
        %v828 = vadd.f32 0.0, %v827
        %v829 = vpop.f32.mrb[0].mxu0
        %v830 = vpop.f32.mrb[0].mxu0
        %v831 = vadd.f32 0.0, %v830
        %v832 = vpop.f32.mrb[0].mxu0
        %833 = vmatprep.mubr.bf16.mxu0 0
        %834 = vmatmul.mubr.bf16.gmra.mrb[0].mxu0 %v773
        %v835 = vpop.f32.mrb[0].mxu0
        %v836 = vadd.f32 0.0, %v835
        %v837 = vpop.f32.mrb[0].mxu0
        %v838 = vpop.f32.mrb[0].mxu0
        %v839 = vadd.f32 0.0, %v838
        %v840 = vpop.f32.mrb[0].mxu0
        %841 = vmatprep.mubr.bf16.mxu0 0
        %842 = vmatmul.mubr.bf16.gmra.mrb[0].mxu0 %v776
        %v843 = vpop.f32.mrb[0].mxu0
        %v844 = vadd.f32 0.0, %v843
        %v845 = vpop.f32.mrb[0].mxu0
        %v846 = vpop.f32.mrb[0].mxu0
        %v847 = vadd.f32 0.0, %v846
        %v848 = vpop.f32.mrb[0].mxu0
        %849 = vmatprep.mubr.bf16.mxu0 0
        %850 = vmatmul.mubr.bf16.gmra.mrb[0].mxu0 %v779
        %v851 = vpop.f32.mrb[0].mxu0
        %v852 = vadd.f32 0.0, %v851
        %v853 = vpop.f32.mrb[0].mxu0
        %v854 = vpop.f32.mrb[0].mxu0
        %v855 = vadd.f32 0.0, %v854
        %v856 = vpop.f32.mrb[0].mxu0
        %857 = vmatprep.mubr.bf16.mxu0 0
        %858 = vmatmul.mubr.bf16.gmra.mrb[0].mxu0 %v782
        %v859 = vpop.f32.mrb[0].mxu0
        %v860 = vadd.f32 0.0, %v859
        %v861 = vpop.f32.mrb[0].mxu0
        %v862 = vpop.f32.mrb[0].mxu0
        %v863 = vadd.f32 0.0, %v862
        %v864 = vpop.f32.mrb[0].mxu0
        %865 = vmatprep.mubr.bf16.mxu0 0
        %866 = vmatmul.mubr.bf16.gmra.mrb[0].mxu0 %v785
        %v867 = vpop.f32.mrb[0].mxu0
        %v868 = vadd.f32 0.0, %v867
        %v869 = vpop.f32.mrb[0].mxu0
        %v870 = vpop.f32.mrb[0].mxu0
        %v871 = vadd.f32 0.0, %v870
        %v872 = vpop.f32.mrb[0].mxu0
        %873 = vmatprep.mubr.bf16.mxu0 0
        %874 = vmatmul.mubr.bf16.gmra.mrb[0].mxu0 %v788
        %v875 = vpop.f32.mrb[0].mxu0
        %v876 = vadd.f32 0.0, %v875
        %v877 = vpop.f32.mrb[0].mxu0
        %v878 = vpop.f32.mrb[0].mxu0
        %v879 = vadd.f32 0.0, %v878
        %v880 = vpop.f32.mrb[0].mxu0
        %881 = vmatprep.mubr.bf16.mxu0 0
        %882 = vmatmul.mubr.bf16.gmra.mrb[0].mxu0 %v791
        %v883 = vpop.f32.mrb[0].mxu0
        %v884 = vadd.f32 0.0, %v883
        %v885 = vpop.f32.mrb[0].mxu0
        %v886 = vpop.f32.mrb[0].mxu0
        %v887 = vadd.f32 0.0, %v886
        %v888 = vpop.f32.mrb[0].mxu0
        %889 = vdwg.mxu0
        %v890 = vmax.f32 %v828, %v844
        %v891 = vmax.f32 %v831, %v847
        %v892 = vmax.f32 %v836, %v852
        %v893 = vmax.f32 %v839, %v855
        %v894 = vmax.f32 %v890, %v860
        %v895 = vmax.f32 %v891, %v863
        %v896 = vmax.f32 %v892, %v868
        %v897 = vmax.f32 %v893, %v871
        %v898 = vmax.f32 %v894, %v876
        %v899 = vmax.f32 %v895, %v879
        %v900 = vmax.f32 %v896, %v884
        %v901 = vmax.f32 %v897, %v887
        %v902 = vmax.f32 %v898, %v899
        %v903 = vmax.f32 %v900, %v901
        %v904 = vmax.f32 %v902, %v903
        %v905 = vrot.slane %v904, 4
        %v906 = vmax.f32 %v904, %v905
        %v907 = vrot.slane %v906, 2
        %v908 = vmax.f32 %v906, %v907
        %v909 = vrot.slane %v908, 1
        %v910 = vmax.f32 %v908, %v909
        %v911 = vsub.f32 %v828, %v910
        %v912 = vsub.f32 %v831, %v910
        %v913 = vsub.f32 %v836, %v910
        %v914 = vsub.f32 %v839, %v910
        %v915 = vsub.f32 %v844, %v910
        %v916 = vsub.f32 %v847, %v910
        %v917 = vsub.f32 %v852, %v910
        %v918 = vsub.f32 %v855, %v910
        %v919 = vsub.f32 %v860, %v910
        %v920 = vsub.f32 %v863, %v910
        %v921 = vsub.f32 %v868, %v910
        %v922 = vsub.f32 %v871, %v910
        %v923 = vsub.f32 %v876, %v910
        %v924 = vsub.f32 %v879, %v910
        %v925 = vsub.f32 %v884, %v910
        %v926 = vsub.f32 %v887, %v910
        %v927 = vmul.f32 %v911, 1.442695
        %v928 = vpow.pop %v927
        %v929 = vmul.f32 %v912, 1.442695
        %v930 = vpow.pop %v929
        %v931 = vmul.f32 %v913, 1.442695
        %v932 = vpow.pop %v931
        %v933 = vmul.f32 %v914, 1.442695
        %v934 = vpow.pop %v933
        %v935 = vmul.f32 %v915, 1.442695
        %v936 = vpow.pop %v935
        %v937 = vmul.f32 %v916, 1.442695
        %v938 = vpow.pop %v937
        %v939 = vmul.f32 %v917, 1.442695
        %v940 = vpow.pop %v939
        %v941 = vmul.f32 %v918, 1.442695
        %v942 = vpow.pop %v941
        %v943 = vmul.f32 %v919, 1.442695
        %v944 = vpow.pop %v943
        %v945 = vmul.f32 %v920, 1.442695
        %v946 = vpow.pop %v945
        %v947 = vmul.f32 %v921, 1.442695
        %v948 = vpow.pop %v947
        %v949 = vmul.f32 %v922, 1.442695
        %v950 = vpow.pop %v949
        %v951 = vmul.f32 %v923, 1.442695
        %v952 = vpow.pop %v951
        %v953 = vmul.f32 %v924, 1.442695
        %v954 = vpow.pop %v953
        %v955 = vmul.f32 %v925, 1.442695
        %v956 = vpow.pop %v955
        %v957 = vmul.f32 %v926, 1.442695
        %v958 = vpow.pop %v957
        %v959 = vadd.f32 %v928, %v930
        %v960 = vadd.f32 %v959, %v932
        %v961 = vadd.f32 %v960, %v934
        %v962 = vadd.f32 %v961, %v936
        %v963 = vadd.f32 %v962, %v938
        %v964 = vadd.f32 %v963, %v940
        %v965 = vadd.f32 %v964, %v942
        %v966 = vadd.f32 %v965, %v944
        %v967 = vadd.f32 %v966, %v946
        %v968 = vadd.f32 %v967, %v948
        %v969 = vadd.f32 %v968, %v950
        %v970 = vadd.f32 %v969, %v952
        %v971 = vadd.f32 %v970, %v954
        %v972 = vadd.f32 %v971, %v956
        %v973 = vadd.f32 %v972, %v958
        %v974 = vrot.slane %v973, 4
        %v975 = vadd.f32 %v973, %v974
        %v976 = vrot.slane %v975, 2
        %v977 = vadd.f32 %v975, %v976
        %v978 = vrot.slane %v977, 1
        %v979 = vadd.f32 %v977, %v978
        %v980 = vpack.c.bf16 %v930, %v928
        %v981 = vpack.c.bf16 %v934, %v932
        %v982 = vpack.c.bf16 %v938, %v936
        %v983 = vpack.c.bf16 %v942, %v940
        %v984 = vpack.c.bf16 %v946, %v944
        %v985 = vpack.c.bf16 %v950, %v948
        %v986 = vpack.c.bf16 %v954, %v952
        %v987 = vpack.c.bf16 %v958, %v956
        %988 = vmatprep.subr.bf16.mxu0 0
        %989 = vmatpush1.bf16.msra.mxu0 %v980
        %990 = vmatprep.subr.bf16.mxu0 0
        %991 = vmatpush1.bf16.msra.mxu0 %v981
        %992 = vmatprep.subr.bf16.mxu0 0
        %993 = vmatpush1.bf16.msra.mxu0 %v982
        %994 = vmatprep.subr.bf16.mxu0 0
        %995 = vmatpush1.bf16.msra.mxu0 %v983
        %996 = vmatprep.subr.bf16.mxu0 0
        %997 = vmatpush1.bf16.msra.mxu0 %v984
        %998 = vmatprep.subr.bf16.mxu0 0
        %999 = vmatpush1.bf16.msra.mxu0 %v985
        %1000 = vmatprep.subr.bf16.mxu0 0
        %1001 = vmatpush1.bf16.msra.mxu0 %v986
        %1002 = vmatprep.subr.bf16.mxu0 0
        %1003 = vmatpush1.bf16.msra.mxu0 %v987
        %1004 = vmatprep.subr.bf16.mxu0 0
        %1005 = vmatpush1.bf16.msra.mxu0 0
        %1006 = vmatprep.subr.bf16.mxu0 0
        %1007 = vmatpush1.bf16.msra.mxu0 0
        %1008 = vmatprep.subr.bf16.mxu0 0
        %1009 = vmatpush1.bf16.msra.mxu0 0
        %1010 = vmatprep.subr.bf16.mxu0 0
        %1011 = vmatpush1.bf16.msra.mxu0 0
        %1012 = vmatprep.subr.bf16.mxu0 0
        %1013 = vmatpush1.bf16.msra.mxu0 0
        %1014 = vmatprep.subr.bf16.mxu0 0
        %1015 = vmatpush1.bf16.msra.mxu0 0
        %1016 = vmatprep.subr.bf16.mxu0 0
        %1017 = vmatpush1.bf16.msra.mxu0 0
        %1018 = vmatprep.subr.bf16.mxu0 0
        %1019 = vmatpush1.bf16.msra.mxu0 0
        %1020 = vmatprep.mubr.bf16.mxu0 0
        %1021 = vmatmul.mubr.bf16.gmra.mrb[0].mxu0 %v751
        %v1022 = vpop.f32.mrb[0].mxu0
        %v1023 = vadd.f32 0.0, %v1022
        %v1024 = vpop.f32.mrb[0].mxu0
        %v1025 = vpop.f32.mrb[0].mxu0
        %v1026 = vadd.f32 0.0, %v1025
        %v1027 = vpop.f32.mrb[0].mxu0
        %1028 = vmatprep.mubr.bf16.mxu0 0
        %1029 = vmatmul.mubr.bf16.gmra.mrb[0].mxu0 %v752
        %v1030 = vpop.f32.mrb[0].mxu0
        %v1031 = vadd.f32 0.0, %v1030
        %v1032 = vpop.f32.mrb[0].mxu0
        %v1033 = vpop.f32.mrb[0].mxu0
        %v1034 = vadd.f32 0.0, %v1033
        %v1035 = vpop.f32.mrb[0].mxu0
        %1036 = vdwg.mxu0
        %v1037 = vrcp.pop %v979
        %v1038 = vmul.f32 %v1023, %v1037
        %v1039 = vmul.f32 %v1026, %v1037
        %v1040 = vmul.f32 %v1031, %v1037
        %v1041 = vmul.f32 %v1034, %v1037
        %1042 = vst [vmem:[%s318] sm:$0xff] %v1038
        %1043 = vst [vmem:[%s318 + $0x8] sm:$0xff] %v1039
        %1044 = vst [vmem:[%s318 + $0x10] sm:$0xff] %v1040
        %1045 = vst [vmem:[%s318 + $0x18] sm:$0xff] %v1041
        %s1046 = sand.u32 %s178, 1
        %s1047 = sand.u32 %s178, 1
        %s1048 = smul.addr %s1047, 32
        %s1049 = scalar_lea.vmem [#allocation3], %s1048
        // Predicated region
        $region87: #{attentional_propagation2.1} parent=81 // pred_check
          %p1050 = pneg %p188
        $region88: #{attentional_propagation2.1} parent=81 // pred_check_branch
          %1052 = sbr.rel (%p1050) target = $region90
        $region89: #{attentional_propagation2.1} parent=81 // pred_region
          %s1053 = smul.addr %s18, 8
          %s1054 = scalar_lea.vmem %s7, %s1053
          // Predicated region
          $region91: #{attentional_propagation2.1} parent=89 // pred_check
            _
          $region92: #{attentional_propagation2.1} parent=89 // pred_check_branch
            %1056 = sbr.rel (0) target = $region94
          $region93: #{attentional_propagation2.1} parent=89 // pred_region
            // Predicated region
            $region95: #{attentional_propagation2.1} parent=93 // pred_check
              _
            $region96: #{attentional_propagation2.1} parent=93 // pred_check_branch
              %1058 = sbr.rel (0) target = $region98
            $region97: #{attentional_propagation2.1} parent=93 // pred_region
              // Predicated region
              $region110: #{attentional_propagation2.1} parent=97 // pred_check
                _
              $region111: #{attentional_propagation2.1} parent=97 // pred_check_branch
                %1079 = sbr.rel (0) target = $region113
              $region112: #{attentional_propagation2.1} parent=97 // pred_region
                loop: start=0, step=1, limit=1
                $region114: #{attentional_propagation2.1} parent=112 // loop_pre_header
                  _
                $region115: #{attentional_propagation2.1} parent=112 // loop_header
                  %s1081 = sphi 0, %s1085
                  %p1082 = scmp.ge.s32.totalorder %s1081, 1
                  %s1086 = sphi %s1049, %s1049
                  %s1087 = sphi %s1054, %s1054
                $region116: #{attentional_propagation2.1} parent=112 // loop_header_branch
                  %1084 = sbr.rel (%p1082) target = $region120
                $region117: #{attentional_propagation2.1} parent=112 // loop_body
                  %v1088 = vld [vmem:[%s1086] sm:$0xff]
                  %1089 = vst [vmem:[%s1087] sm:$0xff] %v1088
                  %v1090 = vld [vmem:[%s1086 + $0x8] sm:$0xff]
                  %1091 = vst [vmem:[%s1087 + $0x10] sm:$0xff] %v1090
                  %v1092 = vld [vmem:[%s1086 + $0x10] sm:$0xff]
                  %1093 = vst [vmem:[%s1087 + $0x20] sm:$0xff] %v1092
                  %v1094 = vld [vmem:[%s1086 + $0x18] sm:$0xff]
                  %1095 = vst [vmem:[%s1087 + $0x30] sm:$0xff] %v1094
                $region118: #{attentional_propagation2.1} parent=112 // loop_footer
                  %s1085 = sadd.s32 1, %s1081
                $region119: #{attentional_propagation2.1} parent=112 // loop_footer_branch
                  %1080 = sbr.rel target = $region115
                $region120: #{attentional_propagation2.1} parent=112 // loop_exit
                  _
              $region113: #{attentional_propagation2.1} parent=97 // pred_fallthru
                _
              // Predicated region
              $region121: #{attentional_propagation2.1} parent=97 // pred_check
                _
              $region122: #{attentional_propagation2.1} parent=97 // pred_check_branch
                %1097 = sbr.rel target = $region124
              $region123: #{attentional_propagation2.1} parent=97 // pred_region
                _
              $region124: #{attentional_propagation2.1} parent=97 // pred_fallthru
                _
            $region98: #{attentional_propagation2.1} parent=93 // pred_fallthru
              _
            // Predicated region
            $region99: #{attentional_propagation2.1} parent=93 // pred_check
              _
            $region100: #{attentional_propagation2.1} parent=93 // pred_check_branch
              %1060 = sbr.rel target = $region102
            $region101: #{attentional_propagation2.1} parent=93 // pred_region
              loop: start=0, step=1, limit=1
              $region103: #{attentional_propagation2.1} parent=101 // loop_pre_header
                _
              $region104: #{attentional_propagation2.1} parent=101 // loop_header
                %s1063 = sphi 0, %s1067
                %p1064 = scmp.ge.s32.totalorder %s1063, 1
                %s1068 = sphi %s1049, %s1049
                %s1069 = sphi %s1054, %s1054
              $region105: #{attentional_propagation2.1} parent=101 // loop_header_branch
                %1066 = sbr.rel (%p1064) target = $region109
              $region106: #{attentional_propagation2.1} parent=101 // loop_body
                %v1070 = vld [vmem:[%s1068] sm:$0xff]
                %1071 = vst [vmem:[%s1069] sm:$0xff] %v1070
                %v1072 = vld [vmem:[%s1068 + $0x8] sm:$0xff]
                %1073 = vst [vmem:[%s1069 + $0x10] sm:$0xff] %v1072
                %v1074 = vld [vmem:[%s1068 + $0x10] sm:$0xff]
                %1075 = vst [vmem:[%s1069 + $0x20] sm:$0xff] %v1074
                %v1076 = vld [vmem:[%s1068 + $0x18] sm:$0xff]
                %1077 = vst [vmem:[%s1069 + $0x30] sm:$0xff] %v1076
              $region107: #{attentional_propagation2.1} parent=101 // loop_footer
                %s1067 = sadd.s32 1, %s1063
              $region108: #{attentional_propagation2.1} parent=101 // loop_footer_branch
                %1062 = sbr.rel target = $region104
              $region109: #{attentional_propagation2.1} parent=101 // loop_exit
                _
            $region102: #{attentional_propagation2.1} parent=93 // pred_fallthru
              _
          $region94: #{attentional_propagation2.1} parent=89 // pred_fallthru
            _
          %1098 = vnop
        $region90: #{attentional_propagation2.1} parent=81 // pred_fallthru
          _
      $region82: #{attentional_propagation2.1} parent=5 // pred_fallthru
        _
      %p1099 = scmp.le.s32.totalorder 2, %s13
      // Predicated region
      $region125: #{attentional_propagation2.1} parent=5 // pred_check
        %p1100 = pneg %p1099
      $region126: #{attentional_propagation2.1} parent=5 // pred_check_branch
        %1102 = sbr.rel (%p1100) target = $region128
      $region127: #{attentional_propagation2.1} parent=5 // pred_region
        %s1103 = ssub.s32 %s13, 2
        // Predicated region
        $region129: #{attentional_propagation2.1} parent=127 // pred_check
          %p1104 = pneg %p194
        $region130: #{attentional_propagation2.1} parent=127 // pred_check_branch
          %1106 = sbr.rel (%p1104) target = $region132
        $region131: #{attentional_propagation2.1} parent=127 // pred_region
          %s1107 = sand.u32 %s179, 1
          %s1108 = sand.u32 %s179, 1
          %s1109 = smul.addr %s1108, 32
          %s1110 = scalar_lea.vmem [#allocation3], %s1109
        $region132: #{attentional_propagation2.1} parent=127 // pred_fallthru
          _
      $region128: #{attentional_propagation2.1} parent=5 // pred_fallthru
        _
    $region6: #{attentional_propagation2.1} parent=1 // loop_footer
      %s17 = sadd.s32 1, %s13
    $region7: #{attentional_propagation2.1} parent=1 // loop_footer_branch
      %12 = sbr.rel target = $region3
    $region8: #{attentional_propagation2.1} parent=1 // loop_exit
      _

</llo_original>
